<compile_context>
chip_gen: v7x
topology: tpu7x:2x2x1
jax: 0.10.0
libtpu: 0.0.40
codegen_flags: <defaults>
</compile_context>

<pallas_src>
import functools

import jax
import jax.numpy as jnp
from jax.experimental import pallas as pl
from jax.experimental.pallas import tpu as pltpu


def _huber_partial_kernel(o_ref, g_ref, sum_ref, cnt_ref, *, delta, rows_total,
                          th, needs_tail_mask, splits, tiles_per_split):
    """Accumulates masked Huber partial sums/counts for one (image-slot, row-tile)."""
    acc_rows = sum_ref.shape[0]
    w = o_ref.shape[-1]
    h_idx = pl.program_id(1)

    # Initialize this slot's resident accumulators on its first row-tile.
    @pl.when(h_idx == 0)
    def _():
        sum_ref[...] = jnp.zeros_like(sum_ref)
        cnt_ref[...] = jnp.zeros_like(cnt_ref)

    # Load native-dtype tiles, upcast to f32 for compute (needed on v5e anyway).
    o = o_ref[...].astype(jnp.float32)   # (th, w); channel 0 selected via BlockSpec
    g = g_ref[...].astype(jnp.float32)   # (th, w)

    mask = g > 0.0
    if needs_tail_mask:
        # Ragged tail: the last row-tile extends past the array; those rows hold
        # undefined data and must not contribute.  Statically skipped when the
        # tile size divides the row count.
        if splits > 1:
            h_blk = (pl.program_id(0) % splits) * tiles_per_split + h_idx
        else:
            h_blk = h_idx
        row = jax.lax.broadcasted_iota(jnp.int32, o.shape, 0) + h_blk * th
        mask = jnp.logical_and(mask, row < rows_total)

    err = jnp.abs(o - g)
    squared_err = 0.5 * err * err
    linear_err = err - 0.5 * delta          # matches the custom PyTorch module
    huber = jnp.where(err < delta, squared_err, linear_err)
    huber = jnp.where(mask, huber, 0.0)     # garbage / NaN rows selected out
    cnt = jnp.where(mask, 1.0, 0.0)

    # Fold sublane groups: layout-trivial reshape + elementwise vreg adds (VPU
    # only — no cross-lane XLU reduce in the hot loop, tiny HBM writeback).
    sum_ref[...] += huber.reshape(-1, acc_rows, w).sum(axis=0)
    cnt_ref[...] += cnt.reshape(-1, acc_rows, w).sum(axis=0)


def huber_loss(outputs, gt, input=None, epoch=0, *, delta=10.0, tile_bytes=2 << 20):
    """Pallas implementation of Huber_loss.forward.

    outputs: (N, C, H, W) array (only channel 0 is used, as in PyTorch).
    gt:      (N, 1, H, W) array.
    Returns a scalar float32 loss (NaN if no gt > 0 element, matching torch.mean([])).
    """
    del input, epoch  # unused, kept for signature parity

    N, C, H, W = outputs.shape

    # ---- Lane-dense layout ---------------------------------------------------
    # Present a last dim that is a multiple of 128 whenever possible so vregs,
    # VMEM tiles and stores are unmasked/unpadded.  Both reshapes are metadata-
    # only on contiguous NCHW arrays; channel-0 selection still works via the
    # index_map because the channel axis is untouched.
    if W % 128 == 0:
        o_arr, g_arr = outputs, gt
        rows_total, width = H, W
    elif (H * W) % 128 == 0:
        rows_total, width = (H * W) // 128, 128
        o_arr = outputs.reshape(N, C, rows_total, width)
        g_arr = gt.reshape(N, 1, rows_total, width)
    else:
        # Fallback: keep (H, W); lane padding costs bandwidth but stays correct.
        o_arr, g_arr = outputs, gt
        rows_total, width = H, W

    # ---- Row-tile size from a byte budget (memory-bound streaming kernel) -----
    o_isz = jnp.dtype(outputs.dtype).itemsize
    g_isz = jnp.dtype(gt.dtype).itemsize
    th = max(8, (int(tile_bytes) // (width * o_isz) // 8) * 8)
    if th >= rows_total:
        th = rows_total                       # single tile, full extent
    else:
        # Prefer a tile size that divides the row count (skips the tail mask).
        for cand in range(th, max(8, th // 2) - 1, -8):
            if rows_total % cand == 0:
                th = cand
                break
    num_h = pl.cdiv(rows_total, th)
    needs_tail_mask = (rows_total % th) != 0
    acc_rows = 8 if th % 8 == 0 else th

    # ---- v7x: keep both TensorCores busy when the batch axis is degenerate ----
    splits = 2 if (N == 1 and num_h >= 2 and num_h % 2 == 0) else 1
    tiles_per_split = num_h // splits

    if splits == 1:
        in_idx = lambda n, h: (n, 0, h, 0)
        out_idx = lambda n, h: (n, 0, 0)
    else:
        in_idx = lambda p, h: (p // splits, 0, (p % splits) * tiles_per_split + h, 0)
        out_idx = lambda p, h: (p, 0, 0)

    # ---- VMEM limit: real footprint + headroom, well under v7x's 64 MiB -------
    in_buf_bytes = 2 * th * width * (o_isz + g_isz)      # 2-deep pipeline, both inputs
    acc_bytes = 2 * 2 * acc_rows * width * 4              # two f32 resident accumulators
    vmem_limit = int(min(max(in_buf_bytes + acc_bytes + (8 << 20), 16 << 20), 48 << 20))

    kernel = functools.partial(
        _huber_partial_kernel, delta=float(delta), rows_total=rows_total, th=th,
        needs_tail_mask=needs_tail_mask, splits=splits,
        tiles_per_split=tiles_per_split)

    sums, cnts = pl.pallas_call(
        kernel,
        out_shape=(
            jax.ShapeDtypeStruct((N * splits, acc_rows, width), jnp.float32),
            jax.ShapeDtypeStruct((N * splits, acc_rows, width), jnp.float32),
        ),
        grid=(N * splits, tiles_per_split),
        in_specs=[
            # Channel 0 of `outputs` selected by the index_map; no wrapper slice.
            pl.BlockSpec((None, None, th, width), in_idx),
            pl.BlockSpec((None, None, th, width), in_idx),
        ],
        out_specs=(
            # Same output block across the row-tile axis -> resident accumulator.
            pl.BlockSpec((None, acc_rows, width), out_idx),
            pl.BlockSpec((None, acc_rows, width), out_idx),
        ),
        compiler_params=pltpu.CompilerParams(
            dimension_semantics=("parallel", "arbitrary"),
            vmem_limit_bytes=vmem_limit,
        ),
    )(o_arr, g_arr)

    # Single cheap cross-lane reduce + divide on a tiny array, outside the kernel.
    total = jnp.sum(sums, dtype=jnp.float32)
    # Exact integer count (each accumulator entry is an exact small integer in f32).
    count = jnp.sum(cnts.astype(jnp.int32))
    return total / count.astype(jnp.float32)   # 0/0 -> NaN, matching torch.mean([])


def huber_loss_ref(outputs, gt, delta=10.0):
    """Pure-JAX reference matching the PyTorch module."""
    o = outputs[:, 0:1, :, :].astype(jnp.float32)
    g = gt.astype(jnp.float32)
    err = jnp.abs(o - g)
    mask = g > 0
    huber = jnp.where(err < delta, 0.5 * err**2, err - 0.5 * delta)
    return jnp.sum(jnp.where(mask, huber, 0.0)) / jnp.sum(mask)


if __name__ == "__main__":
    key = jax.random.PRNGKey(0)
    k1, k2, k3, k4 = jax.random.split(key, 4)

    # Case 1: small NCHW inputs (W not a multiple of 128 -> lane-dense flatten path).
    N, C, H, W = 2, 4, 16, 16
    outputs = jax.random.normal(k1, (N, C, H, W), dtype=jnp.float32) * 5.0
    gt = jax.random.normal(k2, (N, 1, H, W), dtype=jnp.float32) * 5.0
    loss = jax.block_until_ready(huber_loss(outputs, gt, input=None, epoch=0, delta=10.0))
    ref = huber_loss_ref(outputs, gt, delta=10.0)
    assert jnp.allclose(loss, ref, rtol=2e-5, atol=1e-5), (loss, ref)

    # Case 2: N=1 (exercises the 2-way parallel split), ragged row-tile tail,
    # tiny tile budget to force multiple grid steps.
    N2, C2, H2, W2 = 1, 2, 44, 128
    outputs2 = jax.random.normal(k3, (N2, C2, H2, W2), dtype=jnp.float32) * 5.0
    gt2 = jax.random.normal(k4, (N2, 1, H2, W2), dtype=jnp.float32) * 5.0
    loss2 = jax.block_until_ready(
        huber_loss(outputs2, gt2, input=None, epoch=0, delta=10.0, tile_bytes=8 * 128 * 4))
    ref2 = huber_loss_ref(outputs2, gt2, delta=10.0)
    assert jnp.allclose(loss2, ref2, rtol=2e-5, atol=1e-5), (loss2, ref2)

    print("KERNEL_OK")
</pallas_src>

<mosaic_0001>
module attributes {stable_mosaic.version = 11 : i64} {
  func.func @_huber_partial_kernel(%arg0: i32, %arg1: i32, %arg2: memref<1x1x2x128xf32, #tpu.memory_space<vmem>>, %arg3: memref<1x1x2x128xf32, #tpu.memory_space<vmem>>, %arg4: memref<1x2x128xf32, #tpu.memory_space<vmem>>, %arg5: memref<1x2x128xf32, #tpu.memory_space<vmem>>) attributes {dimension_semantics = [#tpu.dimension_semantics<parallel>, #tpu.dimension_semantics<arbitrary>], iteration_bounds = array<i64: 2, 1>, scalar_prefetch = 0 : i64, scratch_operands = 0 : i64, tpu.core_type = #tpu.core_type<tc>, window_params = [{transform_indices = @transform_0, window_bounds = array<i64: 1, 1, 2, 128>}, {transform_indices = @transform_1, window_bounds = array<i64: 1, 1, 2, 128>}, {transform_indices = @transform_2, window_bounds = array<i64: 1, 2, 128>}, {transform_indices = @transform_3, window_bounds = array<i64: 1, 2, 128>}]} {
    %c0_i32 = arith.constant 0 : i32
    %0 = arith.cmpi eq, %arg1, %c0_i32 : i32
    %1 = arith.extui %0 : i1 to i32
    %c0_i32_0 = arith.constant 0 : i32
    %2 = arith.cmpi ne, %1, %c0_i32_0 : i32
    scf.if %2 {
      %cst_28 = arith.constant 0.000000e+00 : f32
      %40 = vector.broadcast %cst_28 : f32 to vector<2x128xf32>
      %c0_29 = arith.constant 0 : index
      %c0_30 = arith.constant 0 : index
      %c0_31 = arith.constant 0 : index
      %41 = vector.load %arg4[%c0_29, %c0_30, %c0_31] : memref<1x2x128xf32, #tpu.memory_space<vmem>>, vector<1x2x128xf32>
      %42 = vector.shape_cast %41 : vector<1x2x128xf32> to vector<2x128xf32>
      %43 = vector.shape_cast %40 : vector<2x128xf32> to vector<1x2x128xf32>
      tpu.vector_store %arg4[%c0_29, %c0_30, %c0_31], %43 {strides = array<i32>} : memref<1x2x128xf32, #tpu.memory_space<vmem>>, vector<1x2x128xf32>,
      %cst_32 = arith.constant 0.000000e+00 : f32
      %44 = vector.broadcast %cst_32 : f32 to vector<2x128xf32>
      %c0_33 = arith.constant 0 : index
      %c0_34 = arith.constant 0 : index
      %c0_35 = arith.constant 0 : index
      %45 = vector.load %arg5[%c0_33, %c0_34, %c0_35] : memref<1x2x128xf32, #tpu.memory_space<vmem>>, vector<1x2x128xf32>
      %46 = vector.shape_cast %45 : vector<1x2x128xf32> to vector<2x128xf32>
      %47 = vector.shape_cast %44 : vector<2x128xf32> to vector<1x2x128xf32>
      tpu.vector_store %arg5[%c0_33, %c0_34, %c0_35], %47 {strides = array<i32>} : memref<1x2x128xf32, #tpu.memory_space<vmem>>, vector<1x2x128xf32>,
    } else {
    }
    %c0 = arith.constant 0 : index
    %c0_1 = arith.constant 0 : index
    %c0_2 = arith.constant 0 : index
    %c0_3 = arith.constant 0 : index
    %3 = vector.load %arg2[%c0, %c0_1, %c0_2, %c0_3] : memref<1x1x2x128xf32, #tpu.memory_space<vmem>>, vector<1x1x2x128xf32>
    %4 = vector.shape_cast %3 : vector<1x1x2x128xf32> to vector<2x128xf32>
    %c0_4 = arith.constant 0 : index
    %c0_5 = arith.constant 0 : index
    %c0_6 = arith.constant 0 : index
    %c0_7 = arith.constant 0 : index
    %5 = vector.load %arg3[%c0_4, %c0_5, %c0_6, %c0_7] : memref<1x1x2x128xf32, #tpu.memory_space<vmem>>, vector<1x1x2x128xf32>
    %6 = vector.shape_cast %5 : vector<1x1x2x128xf32> to vector<2x128xf32>
    %cst = arith.constant 0.000000e+00 : f32
    %7 = vector.broadcast %cst : f32 to vector<2x128xf32>
    %8 = arith.cmpf ogt, %6, %7 : vector<2x128xf32>
    %9 = arith.subf %4, %6 : vector<2x128xf32>
    %10 = math.absf %9 : vector<2x128xf32>
    %cst_8 = arith.constant 5.000000e-01 : f32
    %11 = vector.broadcast %cst_8 : f32 to vector<2x128xf32>
    %12 = arith.mulf %11, %10 : vector<2x128xf32>
    %13 = arith.mulf %12, %10 : vector<2x128xf32>
    %cst_9 = arith.constant 5.000000e+00 : f32
    %14 = vector.broadcast %cst_9 : f32 to vector<2x128xf32>
    %15 = arith.subf %10, %14 : vector<2x128xf32>
    %cst_10 = arith.constant 1.000000e+01 : f32
    %16 = vector.broadcast %cst_10 : f32 to vector<2x128xf32>
    %17 = arith.cmpf olt, %10, %16 : vector<2x128xf32>
    %18 = arith.select %17, %13, %15 : vector<2x128xi1>, vector<2x128xf32>
    %cst_11 = arith.constant 0.000000e+00 : f32
    %19 = vector.broadcast %cst_11 : f32 to vector<2x128xf32>
    %20 = arith.select %8, %18, %19 : vector<2x128xi1>, vector<2x128xf32>
    %cst_12 = arith.constant 1.000000e+00 : f32
    %cst_13 = arith.constant 0.000000e+00 : f32
    %21 = vector.broadcast %cst_12 : f32 to vector<2x128xf32>
    %22 = vector.broadcast %cst_13 : f32 to vector<2x128xf32>
    %23 = arith.select %8, %21, %22 : vector<2x128xi1>, vector<2x128xf32>
    %c0_14 = arith.constant 0 : index
    %c0_15 = arith.constant 0 : index
    %c0_16 = arith.constant 0 : index
    %24 = vector.load %arg4[%c0_14, %c0_15, %c0_16] : memref<1x2x128xf32, #tpu.memory_space<vmem>>, vector<1x2x128xf32>
    %25 = vector.shape_cast %24 : vector<1x2x128xf32> to vector<2x128xf32>
    %26 = vector.shape_cast %20 : vector<2x128xf32> to vector<1x2x128xf32>
    %cst_17 = arith.constant dense<0.000000e+00> : vector<2x128xf32>
    %27 = vector.multi_reduction <add>, %26, %cst_17 [0] : vector<1x2x128xf32> to vector<2x128xf32>
    %28 = arith.addf %25, %27 : vector<2x128xf32>
    %c0_18 = arith.constant 0 : index
    %c0_19 = arith.constant 0 : index
    %c0_20 = arith.constant 0 : index
    %29 = vector.load %arg4[%c0_18, %c0_19, %c0_20] : memref<1x2x128xf32, #tpu.memory_space<vmem>>, vector<1x2x128xf32>
    %30 = vector.shape_cast %29 : vector<1x2x128xf32> to vector<2x128xf32>
    %31 = vector.shape_cast %28 : vector<2x128xf32> to vector<1x2x128xf32>
    tpu.vector_store %arg4[%c0_18, %c0_19, %c0_20], %31 {strides = array<i32>} : memref<1x2x128xf32, #tpu.memory_space<vmem>>, vector<1x2x128xf32>,
    %c0_21 = arith.constant 0 : index
    %c0_22 = arith.constant 0 : index
    %c0_23 = arith.constant 0 : index
    %32 = vector.load %arg5[%c0_21, %c0_22, %c0_23] : memref<1x2x128xf32, #tpu.memory_space<vmem>>, vector<1x2x128xf32>
    %33 = vector.shape_cast %32 : vector<1x2x128xf32> to vector<2x128xf32>
    %34 = vector.shape_cast %23 : vector<2x128xf32> to vector<1x2x128xf32>
    %cst_24 = arith.constant dense<0.000000e+00> : vector<2x128xf32>
    %35 = vector.multi_reduction <add>, %34, %cst_24 [0] : vector<1x2x128xf32> to vector<2x128xf32>
    %36 = arith.addf %33, %35 : vector<2x128xf32>
    %c0_25 = arith.constant 0 : index
    %c0_26 = arith.constant 0 : index
    %c0_27 = arith.constant 0 : index
    %37 = vector.load %arg5[%c0_25, %c0_26, %c0_27] : memref<1x2x128xf32, #tpu.memory_space<vmem>>, vector<1x2x128xf32>
    %38 = vector.shape_cast %37 : vector<1x2x128xf32> to vector<2x128xf32>
    %39 = vector.shape_cast %36 : vector<2x128xf32> to vector<1x2x128xf32>
    tpu.vector_store %arg5[%c0_25, %c0_26, %c0_27], %39 {strides = array<i32>} : memref<1x2x128xf32, #tpu.memory_space<vmem>>, vector<1x2x128xf32>,
    return
  }
  func.func @transform_0(%arg0: i32, %arg1: i32) -> (i32, i32, i32, i32) {
    %c0_i32 = arith.constant 0 : i32
    %c0_i32_0 = arith.constant 0 : i32
    %c0_i32_1 = arith.constant 0 : i32
    return %arg0, %c0_i32, %arg1, %c0_i32_0 : i32, i32, i32, i32
  }
  func.func @transform_1(%arg0: i32, %arg1: i32) -> (i32, i32, i32, i32) {
    %c0_i32 = arith.constant 0 : i32
    %c0_i32_0 = arith.constant 0 : i32
    %c0_i32_1 = arith.constant 0 : i32
    return %arg0, %c0_i32, %arg1, %c0_i32_0 : i32, i32, i32, i32
  }
  func.func @transform_2(%arg0: i32, %arg1: i32) -> (i32, i32, i32) {
    %c0_i32 = arith.constant 0 : i32
    %c0_i32_0 = arith.constant 0 : i32
    %c0_i32_1 = arith.constant 0 : i32
    return %arg0, %c0_i32, %c0_i32_0 : i32, i32, i32
  }
  func.func @transform_3(%arg0: i32, %arg1: i32) -> (i32, i32, i32) {
    %c0_i32 = arith.constant 0 : i32
    %c0_i32_0 = arith.constant 0 : i32
    %c0_i32_1 = arith.constant 0 : i32
    return %arg0, %c0_i32, %c0_i32_0 : i32, i32, i32
  }
}

</mosaic_0001>

<llo_original>
// kernel: tpu_custom_call.1
$region0: #{tpu_custom_call.1}
  #allocation0 [shape = 'u32[]', space=smem, size = 0x4, offset = 0x4, fixed_abs, tag = 'smem constant byte address 0x4 - core index']
  #allocation1 [shape = 'u32[144,128]{1,0:T(1,128)}', space=vmem, size = 0x12000, scoped, tag = 'internal scratch']
  %s0 = inlined_call_operand.hbm [shape: f32[2,4,2,128], index: 0, kind: input, shape index: {}]
  %s1 = inlined_call_operand.hbm [shape: f32[2,1,2,128], index: 1, kind: input, shape index: {}]
  %s2 = inlined_call_operand.hbm [shape: f32[2,2,128], index: 2, kind: output, shape index: {0}]
  %s3 = inlined_call_operand.hbm [shape: f32[2,2,128], index: 3, kind: output, shape index: {1}]
  %4 = xla_tuple %s2, %s3
  %s5 = sld [smem:[#allocation0]]
  $region61: #{tpu_custom_call.1} parent=0
    _
  %s7 = ssub.s32 1, %s5
  %s8 = scalar_select 0, %s7, %s5
  $region1: #{tpu_custom_call.1} parent=0
    #allocation2 [shape = 'u8[2048]{0}', space=vmem, size = 0x800, scoped, tag = 'input window, operand 0']
    #allocation3 [shape = 's32[2]{0}', space=sflag, size = 0x8, scoped, tag = 'scoped memory for tpu_custom_call.1']
    #allocation4 [shape = 's32[2]{0}', space=sflag, size = 0x8, scoped, tag = 'scoped memory for tpu_custom_call.1']
    #allocation5 [shape = 'u8[2048]{0}', space=vmem, size = 0x800, scoped, tag = 'input window, operand 1']
    #allocation6 [shape = 's32[2]{0}', space=sflag, size = 0x8, scoped, tag = 'scoped memory for tpu_custom_call.1']
    #allocation7 [shape = 'u8[2048]{0}', space=vmem, size = 0x800, scoped, tag = 'output window, operand 0']
    #allocation8 [shape = 'u8[2048]{0}', space=vmem, size = 0x800, scoped, tag = 'output window, operand 1']
    #allocation9 [shape = 's32[2]{0}', space=sflag, size = 0x8, scoped, tag = 'scoped memory for tpu_custom_call.1']
    %9 = vsyncpa [#allocation3], 0
    %s10 = scalar_lea.sflag [#allocation3], 1
    %11 = vsyncpa %s10, 0
    %12 = vsyncpa [#allocation6], 0
    %s13 = scalar_lea.sflag [#allocation6], 1
    %14 = vsyncpa %s13, 0
    %15 = vsyncpa [#allocation4], 0
    %s16 = scalar_lea.sflag [#allocation4], 1
    %17 = vsyncpa %s16, 0
    %18 = vsyncpa [#allocation9], 0
    %s19 = scalar_lea.sflag [#allocation9], 1
    %20 = vsyncpa %s19, 0
    loop: start=0, step=1, limit=4
    $region2: #{tpu_custom_call.1} parent=1 // loop_pre_header
      _
    $region3: #{tpu_custom_call.1} parent=1 // loop_header
      %s22 = sphi 0, %s26
      %p23 = scmp.ge.s32.totalorder %s22, 4
      %s29 = sphi 0, %s41
      %s30 = sphi 0, %s37
      %s31 = sphi 0, %s29
      %s32 = sphi 0, %s30
      %s33 = sphi 0, %s31
      %s34 = sphi 0, %s32
      %s46 = sphi 0, %s48
      %s49 = sphi 0, %s46
      %s50 = sphi 0, %s49
      %s66 = sphi 0, %s50
      %s74 = sphi 0, %s76
      %s77 = sphi 0, %s74
      %s78 = sphi 0, %s77
      %s94 = sphi 0, %s78
      %s100 = sphi 0, %s102
      %s103 = sphi 0, %s100
      %s104 = sphi 0, %s103
      %s120 = sphi 0, %s104
      %s126 = sphi 0, %s128
      %s129 = sphi 0, %s126
      %s130 = sphi 0, %s129
      %s146 = sphi 0, %s130
    $region4: #{tpu_custom_call.1} parent=1 // loop_header_branch
      %25 = sbr.rel (%p23) target = $region8
    $region5: #{tpu_custom_call.1} parent=1 // loop_body
      %s27 = ssub.s32 %s22, 1
      %s28 = ssub.s32 %s22, 2
      %s35 = sadd.s32 1, %s30
      %p36 = scmp.ge.s32.totalorder %s35, 1
      %s37 = scalar_select %p36, 0, %s35
      %s38 = sadd.s32 1, %s29
      %s39 = scalar_select %p36, %s38, %s29
      %p40 = scmp.ge.s32.totalorder %s39, 2
      %s41 = scalar_select %p40, 0, %s39
      %s42 = ssub.s32 %s29, %s41
      %s43 = ssub.s32 %s30, %s37
      %s44 = sor.u32 %s42, %s43
      %p45 = scmp.eq.s32.totalorder %s44, 0
      %s47 = sadd.s32 %s46, 1
      %s48 = scalar_select %p45, %s46, %s47
      %p51 = pneg %p45
      %p52 = scmp.eq.s32.totalorder %s22, 1
      %p53 = por %p51, %p52
      %p54 = scmp.ne.s32.totalorder %s46, %s49
      %p55 = scmp.eq.s32.totalorder %s22, 0
      %p56 = por %p54, %p55
      %p57 = scmp.ne.s32.totalorder %s46, %s49
      %p58 = scmp.eq.s32.totalorder %s27, 1
      %p59 = por %p57, %p58
      %p60 = scmp.ne.s32.totalorder %s49, %s50
      %p61 = scmp.eq.s32.totalorder %s27, 0
      %p62 = por %p60, %p61
      %p63 = scmp.ne.s32.totalorder %s49, %s50
      %p64 = scmp.eq.s32.totalorder %s28, 1
      %p65 = por %p63, %p64
      %p67 = scmp.ne.s32.totalorder %s50, %s66
      %p68 = scmp.eq.s32.totalorder %s28, 0
      %p69 = por %p67, %p68
      %s70 = ssub.s32 %s29, %s41
      %s71 = ssub.s32 %s30, %s37
      %s72 = sor.u32 %s70, %s71
      %p73 = scmp.eq.s32.totalorder %s72, 0
      %s75 = sadd.s32 %s74, 1
      %s76 = scalar_select %p73, %s74, %s75
      %p79 = pneg %p73
      %p80 = scmp.eq.s32.totalorder %s22, 1
      %p81 = por %p79, %p80
      %p82 = scmp.ne.s32.totalorder %s74, %s77
      %p83 = scmp.eq.s32.totalorder %s22, 0
      %p84 = por %p82, %p83
      %p85 = scmp.ne.s32.totalorder %s74, %s77
      %p86 = scmp.eq.s32.totalorder %s27, 1
      %p87 = por %p85, %p86
      %p88 = scmp.ne.s32.totalorder %s77, %s78
      %p89 = scmp.eq.s32.totalorder %s27, 0
      %p90 = por %p88, %p89
      %p91 = scmp.ne.s32.totalorder %s77, %s78
      %p92 = scmp.eq.s32.totalorder %s28, 1
      %p93 = por %p91, %p92
      %p95 = scmp.ne.s32.totalorder %s78, %s94
      %p96 = scmp.eq.s32.totalorder %s28, 0
      %p97 = por %p95, %p96
      %s98 = ssub.s32 %s29, %s41
      %p99 = scmp.eq.s32.totalorder %s98, 0
      %s101 = sadd.s32 %s100, 1
      %s102 = scalar_select %p99, %s100, %s101
      %p105 = pneg %p99
      %p106 = scmp.eq.s32.totalorder %s22, 1
      %p107 = por %p105, %p106
      %p108 = scmp.ne.s32.totalorder %s100, %s103
      %p109 = scmp.eq.s32.totalorder %s22, 0
      %p110 = por %p108, %p109
      %p111 = scmp.ne.s32.totalorder %s100, %s103
      %p112 = scmp.eq.s32.totalorder %s27, 1
      %p113 = por %p111, %p112
      %p114 = scmp.ne.s32.totalorder %s103, %s104
      %p115 = scmp.eq.s32.totalorder %s27, 0
      %p116 = por %p114, %p115
      %p117 = scmp.ne.s32.totalorder %s103, %s104
      %p118 = scmp.eq.s32.totalorder %s28, 1
      %p119 = por %p117, %p118
      %p121 = scmp.ne.s32.totalorder %s104, %s120
      %p122 = scmp.eq.s32.totalorder %s28, 0
      %p123 = por %p121, %p122
      %s124 = ssub.s32 %s29, %s41
      %p125 = scmp.eq.s32.totalorder %s124, 0
      %s127 = sadd.s32 %s126, 1
      %s128 = scalar_select %p125, %s126, %s127
      %p131 = pneg %p125
      %p132 = scmp.eq.s32.totalorder %s22, 1
      %p133 = por %p131, %p132
      %p134 = scmp.ne.s32.totalorder %s126, %s129
      %p135 = scmp.eq.s32.totalorder %s22, 0
      %p136 = por %p134, %p135
      %p137 = scmp.ne.s32.totalorder %s126, %s129
      %p138 = scmp.eq.s32.totalorder %s27, 1
      %p139 = por %p137, %p138
      %p140 = scmp.ne.s32.totalorder %s129, %s130
      %p141 = scmp.eq.s32.totalorder %s27, 0
      %p142 = por %p140, %p141
      %p143 = scmp.ne.s32.totalorder %s129, %s130
      %p144 = scmp.eq.s32.totalorder %s28, 1
      %p145 = por %p143, %p144
      %p147 = scmp.ne.s32.totalorder %s130, %s146
      %p148 = scmp.eq.s32.totalorder %s28, 0
      %p149 = por %p147, %p148
      %p150 = scmp.le.s32.totalorder 1, %s22
      %p151 = scmp.lt.s32.totalorder %s22, 3
      %p152 = pnand %p150, %p151
      %p153 = pneg %p152
      // Predicated region
      $region9: #{tpu_custom_call.1} parent=5 // pred_check
        _
      $region10: #{tpu_custom_call.1} parent=5 // pred_check_branch
        %155 = sbr.rel (%p152) target = $region12
      $region11: #{tpu_custom_call.1} parent=5 // pred_region
        %s156 = ssub.s32 %s22, 1
      $region12: #{tpu_custom_call.1} parent=5 // pred_fallthru
        _
      %p157 = scmp.lt.s32.totalorder %s22, 2
      // Predicated region
      $region13: #{tpu_custom_call.1} parent=5 // pred_check
        %p158 = pneg %p157
      $region14: #{tpu_custom_call.1} parent=5 // pred_check_branch
        %160 = sbr.rel (%p158) target = $region16
      $region15: #{tpu_custom_call.1} parent=5 // pred_region
        // Predicated region
        $region17: #{tpu_custom_call.1} parent=15 // pred_check
          %p161 = pneg %p56
        $region18: #{tpu_custom_call.1} parent=15 // pred_check_branch
          %163 = sbr.rel (%p161) target = $region20
        $region19: #{tpu_custom_call.1} parent=15 // pred_region
          %s164 = sand.u32 %s46, 1
          %s165 = scalar_lea.sflag [#allocation3], %s164
          %s166 = sand.u32 %s46, 1
          %s167 = smul.addr %s166, 2
          %s168 = scalar_lea.vmem [#allocation2], %s167
          %s170 = ssub.s32 32, 32
          %171 = vsyncadd %s165, %s170
          %s172 = smul.addr %s29, 4
          %s173 = sadd.s32 %s30, %s172
          %s174 = smul.addr %s173, 32
          %s175 = scalar_lea.hbm %s0, %s174
          %s177 = sshll.u32 %s168, 4
          %s178 = int_to_ptr.vmem [resolvable:$true] %s177
          %180 = dma.hbm_to_vmem [thread:$0]  %s175, 32, %s178, %s165
        $region20: #{tpu_custom_call.1} parent=15 // pred_fallthru
          _
        // Predicated region
        $region21: #{tpu_custom_call.1} parent=15 // pred_check
          %p181 = pneg %p84
        $region22: #{tpu_custom_call.1} parent=15 // pred_check_branch
          %183 = sbr.rel (%p181) target = $region24
        $region23: #{tpu_custom_call.1} parent=15 // pred_region
          %s184 = sand.u32 %s74, 1
          %s185 = scalar_lea.sflag [#allocation6], %s184
          %s186 = sand.u32 %s74, 1
          %s187 = smul.addr %s186, 2
          %s188 = scalar_lea.vmem [#allocation5], %s187
          %s190 = ssub.s32 32, 32
          %191 = vsyncadd %s185, %s190
          %s192 = sadd.s32 %s30, %s29
          %s193 = smul.addr %s192, 32
          %s194 = scalar_lea.hbm %s1, %s193
          %s196 = sshll.u32 %s188, 4
          %s197 = int_to_ptr.vmem [resolvable:$true] %s196
          %199 = dma.hbm_to_vmem [thread:$0]  %s194, 32, %s197, %s185
        $region24: #{tpu_custom_call.1} parent=15 // pred_fallthru
          _
      $region16: #{tpu_custom_call.1} parent=5 // pred_fallthru
        _
      %p200 = scmp.le.s32.totalorder 1, %s22
      %p201 = scmp.lt.s32.totalorder %s22, 3
      %p202 = pnand %p200, %p201
      %p203 = pneg %p202
      // Predicated region
      $region25: #{tpu_custom_call.1} parent=5 // pred_check
        _
      $region26: #{tpu_custom_call.1} parent=5 // pred_check_branch
        %205 = sbr.rel (%p202) target = $region28
      $region27: #{tpu_custom_call.1} parent=5 // pred_region
        %s206 = ssub.s32 %s22, 1
        %s207 = sand.u32 %s49, 1
        %s208 = scalar_lea.sflag [#allocation3], %s207
        %s209 = sand.u32 %s49, 1
        %s210 = smul.addr %s209, 2
        %s211 = scalar_lea.vmem [#allocation2], %s210
        // Predicated region
        $region29: #{tpu_custom_call.1} parent=27 // pred_check
          %p212 = pneg %p62
        $region30: #{tpu_custom_call.1} parent=27 // pred_check_branch
          %214 = sbr.rel (%p212) target = $region32
        $region31: #{tpu_custom_call.1} parent=27 // pred_region
          %215 = dma.done %s208, 32
        $region32: #{tpu_custom_call.1} parent=27 // pred_fallthru
          _
        %s216 = sand.u32 %s77, 1
        %s217 = scalar_lea.sflag [#allocation6], %s216
        %s218 = sand.u32 %s77, 1
        %s219 = smul.addr %s218, 2
        %s220 = scalar_lea.vmem [#allocation5], %s219
        // Predicated region
        $region33: #{tpu_custom_call.1} parent=27 // pred_check
          %p221 = pneg %p90
        $region34: #{tpu_custom_call.1} parent=27 // pred_check_branch
          %223 = sbr.rel (%p221) target = $region36
        $region35: #{tpu_custom_call.1} parent=27 // pred_region
          %224 = dma.done %s217, 32
        $region36: #{tpu_custom_call.1} parent=27 // pred_fallthru
          _
        %s225 = sand.u32 %s49, 1
        %s226 = scalar_lea.sflag [#allocation3], %s225
        %s227 = sand.u32 %s49, 1
        %s228 = smul.addr %s227, 2
        %s229 = scalar_lea.vmem [#allocation2], %s228
        %p230 = pneg %p62
        %p231 = pneg %p59
        %s232 = sand.u32 %s77, 1
        %s233 = scalar_lea.sflag [#allocation6], %s232
        %s234 = sand.u32 %s77, 1
        %s235 = smul.addr %s234, 2
        %s236 = scalar_lea.vmem [#allocation5], %s235
        %p237 = pneg %p90
        %p238 = pneg %p87
        %p239 = pneg %p116
        %p240 = pneg %p113
        %s241 = sand.u32 %s103, 1
        %s242 = scalar_lea.sflag [#allocation4], %s241
        %s243 = sand.u32 %s103, 1
        %s244 = smul.addr %s243, 2
        %s245 = scalar_lea.vmem [#allocation7], %s244
        %p246 = pneg %p142
        %p247 = pneg %p139
        %s248 = sand.u32 %s129, 1
        %s249 = scalar_lea.sflag [#allocation9], %s248
        %s250 = sand.u32 %s129, 1
        %s251 = smul.addr %s250, 2
        %s252 = scalar_lea.vmem [#allocation8], %s251
        %p253 = scmp.eq.s32.totalorder %s32, 0
        // Predicated region
        $region37: #{tpu_custom_call.1} parent=27 // pred_check
          %p254 = pneg %p253
        $region38: #{tpu_custom_call.1} parent=27 // pred_check_branch
          %256 = sbr.rel (%p254) target = $region40
        $region39: #{tpu_custom_call.1} parent=27 // pred_region
          %257 = vst [vmem:[%s245] sm:$0x3] 0.0
          %258 = vst [vmem:[%s252] sm:$0x3] 0.0
        $region40: #{tpu_custom_call.1} parent=27 // pred_fallthru
          _
        %v259 = vld [vmem:[%s211] sm:$0x3]
        %v260 = vld [vmem:[%s220] sm:$0x3]
        %vm261 = vcmp.gt.f32.partialorder %v260, 0.0
        %v262 = vsub.f32 %v259, %v260
        %v263 = vand.u32 2147483647, %v262
        %v264 = vmul.f32 %v263, 0.5
        %v265 = vmul.f32 %v264, %v263
        %v266 = vsub.f32 %v263, 5.0
        %vm267 = vcmp.lt.f32.partialorder %v263, 10.0
        %v268 = vsel %vm267, %v265, %v266
        %v269 = vsel %vm261, %v268, 0.0
        %v270 = vsel %vm261, 1.0, 0.0
        %v271 = vld [vmem:[%s245] sm:$0x3]
        %v272 = vadd.f32 %v269, 0.0
        %v273 = vadd.f32 %v271, %v272
        %274 = vst [vmem:[%s245] sm:$0x3] %v273
        %v275 = vld [vmem:[%s252] sm:$0x3]
        %v276 = vadd.f32 %v270, 0.0
        %v277 = vadd.f32 %v275, %v276
        %278 = vst [vmem:[%s252] sm:$0x3] %v277
        %s279 = sand.u32 %s103, 1
        %s280 = scalar_lea.sflag [#allocation4], %s279
        %s281 = sand.u32 %s103, 1
        %s282 = smul.addr %s281, 2
        %s283 = scalar_lea.vmem [#allocation7], %s282
        %s284 = sand.u32 %s129, 1
        %s285 = scalar_lea.sflag [#allocation9], %s284
        %s286 = sand.u32 %s129, 1
        %s287 = smul.addr %s286, 2
        %s288 = scalar_lea.vmem [#allocation8], %s287
        // Predicated region
        $region41: #{tpu_custom_call.1} parent=27 // pred_check
          %p289 = pneg %p113
        $region42: #{tpu_custom_call.1} parent=27 // pred_check_branch
          %291 = sbr.rel (%p289) target = $region44
        $region43: #{tpu_custom_call.1} parent=27 // pred_region
          %s293 = ssub.s32 32, 32
          %294 = vsyncadd %s280, %s293
          %s295 = smul.addr %s31, 32
          %s296 = scalar_lea.hbm %s2, %s295
          %s298 = sshll.u32 %s283, 4
          %s299 = int_to_ptr.vmem [resolvable:$true] %s298
          %301 = dma.vmem_to_hbm [thread:$0]  %s299, 32, %s296, %s280
        $region44: #{tpu_custom_call.1} parent=27 // pred_fallthru
          _
        // Predicated region
        $region45: #{tpu_custom_call.1} parent=27 // pred_check
          %p302 = pneg %p139
        $region46: #{tpu_custom_call.1} parent=27 // pred_check_branch
          %304 = sbr.rel (%p302) target = $region48
        $region47: #{tpu_custom_call.1} parent=27 // pred_region
          %s306 = ssub.s32 32, 32
          %307 = vsyncadd %s285, %s306
          %s308 = smul.addr %s31, 32
          %s309 = scalar_lea.hbm %s3, %s308
          %s311 = sshll.u32 %s288, 4
          %s312 = int_to_ptr.vmem [resolvable:$true] %s311
          %314 = dma.vmem_to_hbm [thread:$0]  %s312, 32, %s309, %s285
        $region48: #{tpu_custom_call.1} parent=27 // pred_fallthru
          _
      $region28: #{tpu_custom_call.1} parent=5 // pred_fallthru
        _
      %p315 = scmp.le.s32.totalorder 2, %s22
      // Predicated region
      $region49: #{tpu_custom_call.1} parent=5 // pred_check
        %p316 = pneg %p315
      $region50: #{tpu_custom_call.1} parent=5 // pred_check_branch
        %318 = sbr.rel (%p316) target = $region52
      $region51: #{tpu_custom_call.1} parent=5 // pred_region
        %s319 = ssub.s32 %s22, 2
        // Predicated region
        $region53: #{tpu_custom_call.1} parent=51 // pred_check
          %p320 = pneg %p119
        $region54: #{tpu_custom_call.1} parent=51 // pred_check_branch
          %322 = sbr.rel (%p320) target = $region56
        $region55: #{tpu_custom_call.1} parent=51 // pred_region
          %s323 = sand.u32 %s104, 1
          %s324 = scalar_lea.sflag [#allocation4], %s323
          %s325 = sand.u32 %s104, 1
          %s326 = smul.addr %s325, 2
          %s327 = scalar_lea.vmem [#allocation7], %s326
          %328 = dma.done %s324, 32
        $region56: #{tpu_custom_call.1} parent=51 // pred_fallthru
          _
        // Predicated region
        $region57: #{tpu_custom_call.1} parent=51 // pred_check
          %p329 = pneg %p145
        $region58: #{tpu_custom_call.1} parent=51 // pred_check_branch
          %331 = sbr.rel (%p329) target = $region60
        $region59: #{tpu_custom_call.1} parent=51 // pred_region
          %s332 = sand.u32 %s130, 1
          %s333 = scalar_lea.sflag [#allocation9], %s332
          %s334 = sand.u32 %s130, 1
          %s335 = smul.addr %s334, 2
          %s336 = scalar_lea.vmem [#allocation8], %s335
          %337 = dma.done %s333, 32
        $region60: #{tpu_custom_call.1} parent=51 // pred_fallthru
          _
      $region52: #{tpu_custom_call.1} parent=5 // pred_fallthru
        _
    $region6: #{tpu_custom_call.1} parent=1 // loop_footer
      %s26 = sadd.s32 1, %s22
    $region7: #{tpu_custom_call.1} parent=1 // loop_footer_branch
      %21 = sbr.rel target = $region3
    $region8: #{tpu_custom_call.1} parent=1 // loop_exit
      _
    %338 = vsyncpa [#allocation3], 1
    %s339 = scalar_lea.sflag [#allocation3], 1
    %340 = vsyncpa %s339, 1
    %341 = vsyncpa [#allocation6], 1
    %s342 = scalar_lea.sflag [#allocation6], 1
    %343 = vsyncpa %s342, 1
    %344 = vsyncpa [#allocation4], 1
    %s345 = scalar_lea.sflag [#allocation4], 1
    %346 = vsyncpa %s345, 1
    %347 = vsyncpa [#allocation9], 1
    %s348 = scalar_lea.sflag [#allocation9], 1
    %349 = vsyncpa %s348, 1

</llo_original>
